<compile_context>
chip_gen: v7x
topology: tpu7x:2x2x1
jax: 0.10.0
libtpu: 0.0.40
codegen_flags: <defaults>
</compile_context>

<pallas_src>
import jax
import jax.numpy as jnp
import numpy as np
from jax import lax
from jax.experimental import pallas as pl
from jax.experimental.pallas import tpu as pltpu


def _build_pass1(Cin, Cout, H, W, BH):
    """Fused conv0 + dw(dil1) + dw(dil2) + add + per-image BN partial sums."""
    Wp = W + 4          # 2 pad columns each side
    Hp = H + 5          # 2 top / 3 bottom pad rows: the extra row keeps every
                        # tap window read in bounds for the last row band
    SP = Hp * Wp
    S = H * W
    n_bands = -(-H // BH)

    def kernel(xp_ref, w0_ref, w1_ref, w2_ref, s_ref, stats_ref, y_scr, d_scr):
        # xp_ref   : (1, Cin, SP)   zero-padded input image, channel-major flat
        # w0_ref   : (Cout, Cin)    1x1 conv weights
        # w1_ref   : (Cout, 9)      depthwise taps, dilation=1 (row-major 3x3)
        # w2_ref   : (Cout, 9)      depthwise taps, dilation=2
        # s_ref    : (1, Cout, S)   d1 + d2 (pre-BN), bf16, dense spatial
        # stats_ref: (1, Cout, 2)   per-image [sum, sum-of-squares] per channel
        # y_scr    : (Cout, SP)     padded conv0 output (VMEM only, never HBM)
        # d_scr    : (Cout, S)      dense (pad-columns cropped) d1+d2 in f32
        xp = xp_ref[0]                                        # (Cin, SP)
        w0 = w0_ref[...]
        if Cin >= 16:
            # enough contraction depth to be worth the MXU
            y = jnp.dot(w0, xp, preferred_element_type=jnp.float32)
        else:
            # 1x1 conv as Cin broadcast FMAs on the VPU (channel-major native)
            y = w0[:, 0:1] * xp[0:1, :]
            for ci in range(1, Cin):
                y = y + w0[:, ci:ci + 1] * xp[ci:ci + 1, :]
        y_scr[...] = y

        # hoist the 18 (Cout, 1) per-tap weight slices out of the tap loops
        w1 = w1_ref[...]
        w2 = w2_ref[...]
        w1t = [w1[:, k:k + 1] for k in range(9)]
        w2t = [w2[:, k:k + 1] for k in range(9)]

        for b in range(n_bands):
            h0 = b * BH
            bh = min(BH, H - h0)
            L = bh * Wp
            # register-resident accumulator for this row band (a few vregs);
            # initialized from the first tap pair (no zeros + add).
            acc = None
            for i in range(3):
                for j in range(3):
                    k = 3 * i + j
                    o1 = (h0 + 1 + i) * Wp + (1 + j)          # dil=1, pad=1
                    o2 = (h0 + 2 * i) * Wp + (2 * j)          # dil=2, pad=2
                    v = (y_scr[:, o1:o1 + L] * w1t[k]
                         + y_scr[:, o2:o2 + L] * w2t[k])
                    acc = v if acc is None else acc + v
            # crop the 4 pad columns of every row -> dense spatial layout
            for r in range(bh):
                c0 = (h0 + r) * W
                d_scr[:, c0:c0 + W] = acc[:, r * Wp:r * Wp + W]

        dense = d_scr[...]                                    # (Cout, S) f32
        s_ref[0] = dense.astype(s_ref.dtype)
        # per-image partial BatchNorm statistics (finalized outside, in f32)
        stats_ref[0, :, 0:1] = jnp.sum(dense, axis=1, keepdims=True)
        stats_ref[0, :, 1:2] = jnp.sum(dense * dense, axis=1, keepdims=True)

    return kernel


def _bn_apply_kernel(s_ref, scale_ref, shift_ref, o_ref):
    # Pure elementwise FMA: out = s * scale + shift (per-channel broadcast).
    o_ref[...] = (s_ref[...].astype(jnp.float32) * scale_ref[...]
                  + shift_ref[...])


def dilated_parallel_conv_block_d2(x_nchw, w0, w1, w2, gamma, beta, eps=1e-5):
    """x_nchw: (N, Cin, H, W); w0: (Cout, Cin, 1, 1); w1/w2: (Cout, 1, 3, 3)."""
    N, Cin, H, W = x_nchw.shape
    Cout = w0.shape[0]
    f32 = jnp.float32
    Wp, Hp = W + 4, H + 5
    S, SP = H * W, Hp * Wp

    # Row band sized so the depthwise accumulator stays <= ~16 vregs.
    BH = max(1, min(H, 16384 // (max(Cout, 8) * Wp)))
    pass1_kernel = _build_pass1(Cin, Cout, H, W, BH)

    # ---- glue: zero-pad the (small) input; channel-major is NCHW-native so
    # no transpose is needed and the flatten is metadata-only.
    xp = jnp.pad(x_nchw.astype(f32), ((0, 0), (0, 0), (2, 3), (2, 2)))
    xp = xp.reshape(N, Cin, SP)

    # ---- weight re-layout (tiny)
    w0_k = w0[:, :, 0, 0].astype(f32)                         # (Cout, Cin)
    w1_k = w1[:, 0].reshape(Cout, 9).astype(f32)              # (Cout, 9)
    w2_k = w2[:, 0].reshape(Cout, 9).astype(f32)

    # ---- pass 1: fused conv0 + dw(d1) + dw(d2) + add, plus per-image BN sums
    flops = 2 * N * Cin * Cout * SP + 2 * 18 * N * Cout * H * Wp
    bytes_accessed = (4 * (N * Cin * SP + N * Cout * 2 + Cout * (Cin + 18))
                      + 2 * N * Cout * S)
    s, stats = pl.pallas_call(
        pass1_kernel,
        out_shape=(jax.ShapeDtypeStruct((N, Cout, S), jnp.bfloat16),
                   jax.ShapeDtypeStruct((N, Cout, 2), f32)),
        grid=(N,),
        in_specs=[pl.BlockSpec((1, Cin, SP), lambda n: (n, 0, 0)),
                  pl.BlockSpec((Cout, Cin), lambda n: (0, 0)),
                  pl.BlockSpec((Cout, 9), lambda n: (0, 0)),
                  pl.BlockSpec((Cout, 9), lambda n: (0, 0))],
        out_specs=(pl.BlockSpec((1, Cout, S), lambda n: (n, 0, 0)),
                   pl.BlockSpec((1, Cout, 2), lambda n: (n, 0, 0))),
        scratch_shapes=[pltpu.VMEM((Cout, SP), f32),
                        pltpu.VMEM((Cout, S), f32)],
        compiler_params=pltpu.CompilerParams(dimension_semantics=("parallel",)),
        cost_estimate=pl.CostEstimate(flops=flops, transcendentals=0,
                                      bytes_accessed=bytes_accessed),
    )(xp, w0_k, w1_k, w2_k)

    # ---- BN finalize (training-mode biased stats): tiny per-channel JAX math.
    # (E[x^2]-E[x]^2 in f32; adequate here -- see review's correctness note.)
    cnt = jnp.float32(N * H * W)
    ssum = jnp.sum(stats[:, :, 0], axis=0)
    ssq = jnp.sum(stats[:, :, 1], axis=0)
    mean = ssum / cnt
    var = jnp.maximum(ssq / cnt - mean * mean, 0.0)
    scale = gamma.astype(f32) * lax.rsqrt(var + eps)
    shift = beta.astype(f32) - mean * scale
    scale3 = scale.reshape(1, Cout, 1)
    shift3 = shift.reshape(1, Cout, 1)

    # ---- pass 2: lane-dense elementwise scale/shift, emits NCHW directly.
    TS = min(-(-S // 128) * 128, 2048)        # lane tile (multiple of 128)
    nt = -(-S // TS)
    out_flat = pl.pallas_call(
        _bn_apply_kernel,
        out_shape=jax.ShapeDtypeStruct((N, Cout, S), f32),
        grid=(N, nt),
        in_specs=[pl.BlockSpec((1, Cout, TS), lambda n, t: (n, 0, t)),
                  pl.BlockSpec((1, Cout, 1), lambda n, t: (0, 0, 0)),
                  pl.BlockSpec((1, Cout, 1), lambda n, t: (0, 0, 0))],
        out_specs=pl.BlockSpec((1, Cout, TS), lambda n, t: (n, 0, t)),
        compiler_params=pltpu.CompilerParams(
            dimension_semantics=("parallel", "parallel")),
    )(s, scale3, shift3)

    return out_flat.reshape(N, Cout, H, W)


def ref_forward(x, w0, w1, w2, gamma, beta):
    # Pure-JAX reference mirroring the PyTorch forward (training-mode BN).
    dn = ('NCHW', 'OIHW', 'NCHW')
    C = w0.shape[0]
    y = lax.conv_general_dilated(x, w0, (1, 1), 'VALID',
                                 dimension_numbers=dn,
                                 precision=lax.Precision.HIGHEST)
    d1 = lax.conv_general_dilated(y, w1, (1, 1), [(1, 1), (1, 1)],
                                  rhs_dilation=(1, 1), feature_group_count=C,
                                  dimension_numbers=dn,
                                  precision=lax.Precision.HIGHEST)
    d2 = lax.conv_general_dilated(y, w2, (1, 1), [(2, 2), (2, 2)],
                                  rhs_dilation=(2, 2), feature_group_count=C,
                                  dimension_numbers=dn,
                                  precision=lax.Precision.HIGHEST)
    o = d1 + d2
    mean = o.mean(axis=(0, 2, 3), keepdims=True)
    var = ((o - mean) ** 2).mean(axis=(0, 2, 3), keepdims=True)
    return ((o - mean) * lax.rsqrt(var + 1e-5) * gamma.reshape(1, -1, 1, 1)
            + beta.reshape(1, -1, 1, 1))


if __name__ == "__main__":
    key = jax.random.PRNGKey(0)
    kx, k0, k1, k2, kg, kb = jax.random.split(key, 6)

    N, Cin, Cout, H, W = 2, 4, 8, 16, 16
    x = jax.random.normal(kx, (N, Cin, H, W), jnp.float32)
    w0 = 0.5 * jax.random.normal(k0, (Cout, Cin, 1, 1), jnp.float32)
    w1 = 0.5 * jax.random.normal(k1, (Cout, 1, 3, 3), jnp.float32)
    w2 = 0.5 * jax.random.normal(k2, (Cout, 1, 3, 3), jnp.float32)
    gamma = 1.0 + 0.1 * jax.random.normal(kg, (Cout,), jnp.float32)
    beta = 0.1 * jax.random.normal(kb, (Cout,), jnp.float32)

    out = dilated_parallel_conv_block_d2(x, w0, w1, w2, gamma, beta)
    out = jax.block_until_ready(out)

    ref = ref_forward(x, w0, w1, w2, gamma, beta)
    np.testing.assert_allclose(np.asarray(out), np.asarray(ref),
                               rtol=1e-2, atol=1e-2)
    print("KERNEL_OK")
</pallas_src>

<mosaic_0001>
module attributes {stable_mosaic.version = 11 : i64} {
  func.func @kernel(%arg0: i32, %arg1: memref<1x4x420xf32, #tpu.memory_space<vmem>>, %arg2: memref<8x4xf32, #tpu.memory_space<vmem>>, %arg3: memref<8x9xf32, #tpu.memory_space<vmem>>, %arg4: memref<8x9xf32, #tpu.memory_space<vmem>>, %arg5: memref<1x8x256xbf16, #tpu.memory_space<vmem>>, %arg6: memref<1x8x2xf32, #tpu.memory_space<vmem>>, %arg7: memref<8x420xf32, #tpu.memory_space<vmem>>, %arg8: memref<8x256xf32, #tpu.memory_space<vmem>>) attributes {dimension_semantics = [#tpu.dimension_semantics<parallel>], iteration_bounds = array<i64: 2>, scalar_prefetch = 0 : i64, scratch_operands = 2 : i64, tpu.core_type = #tpu.core_type<tc>, window_params = [{transform_indices = @transform_0, window_bounds = array<i64: 1, 4, 420>}, {pipeline_mode = #tpu.pipeline_mode<synchronous>, transform_indices = @transform_1, window_bounds = array<i64: 8, 4>}, {pipeline_mode = #tpu.pipeline_mode<synchronous>, transform_indices = @transform_2, window_bounds = array<i64: 8, 9>}, {pipeline_mode = #tpu.pipeline_mode<synchronous>, transform_indices = @transform_3, window_bounds = array<i64: 8, 9>}, {transform_indices = @transform_4, window_bounds = array<i64: 1, 8, 256>}, {transform_indices = @transform_5, window_bounds = array<i64: 1, 8, 2>}]} {
    %c0 = arith.constant 0 : index
    %c0_0 = arith.constant 0 : index
    %c0_1 = arith.constant 0 : index
    %0 = vector.load %arg1[%c0, %c0_0, %c0_1] : memref<1x4x420xf32, #tpu.memory_space<vmem>>, vector<1x4x420xf32>
    %1 = vector.shape_cast %0 : vector<1x4x420xf32> to vector<4x420xf32>
    %c0_2 = arith.constant 0 : index
    %c0_3 = arith.constant 0 : index
    %2 = vector.load %arg2[%c0_2, %c0_3] : memref<8x4xf32, #tpu.memory_space<vmem>>, vector<8x4xf32>
    %3 = vector.extract_strided_slice %2 {offsets = [0, 0], sizes = [8, 1], strides = [1, 1]} : vector<8x4xf32> to vector<8x1xf32>
    %4 = vector.extract_strided_slice %1 {offsets = [0, 0], sizes = [1, 420], strides = [1, 1]} : vector<4x420xf32> to vector<1x420xf32>
    %5 = vector.broadcast %3 : vector<8x1xf32> to vector<8x420xf32>
    %6 = vector.broadcast %4 : vector<1x420xf32> to vector<8x420xf32>
    %7 = arith.mulf %5, %6 : vector<8x420xf32>
    %8 = vector.extract_strided_slice %2 {offsets = [0, 1], sizes = [8, 1], strides = [1, 1]} : vector<8x4xf32> to vector<8x1xf32>
    %9 = vector.extract_strided_slice %1 {offsets = [1, 0], sizes = [1, 420], strides = [1, 1]} : vector<4x420xf32> to vector<1x420xf32>
    %10 = vector.broadcast %8 : vector<8x1xf32> to vector<8x420xf32>
    %11 = vector.broadcast %9 : vector<1x420xf32> to vector<8x420xf32>
    %12 = arith.mulf %10, %11 : vector<8x420xf32>
    %13 = arith.addf %7, %12 : vector<8x420xf32>
    %14 = vector.extract_strided_slice %2 {offsets = [0, 2], sizes = [8, 1], strides = [1, 1]} : vector<8x4xf32> to vector<8x1xf32>
    %15 = vector.extract_strided_slice %1 {offsets = [2, 0], sizes = [1, 420], strides = [1, 1]} : vector<4x420xf32> to vector<1x420xf32>
    %16 = vector.broadcast %14 : vector<8x1xf32> to vector<8x420xf32>
    %17 = vector.broadcast %15 : vector<1x420xf32> to vector<8x420xf32>
    %18 = arith.mulf %16, %17 : vector<8x420xf32>
    %19 = arith.addf %13, %18 : vector<8x420xf32>
    %20 = vector.extract_strided_slice %2 {offsets = [0, 3], sizes = [8, 1], strides = [1, 1]} : vector<8x4xf32> to vector<8x1xf32>
    %21 = vector.extract_strided_slice %1 {offsets = [3, 0], sizes = [1, 420], strides = [1, 1]} : vector<4x420xf32> to vector<1x420xf32>
    %22 = vector.broadcast %20 : vector<8x1xf32> to vector<8x420xf32>
    %23 = vector.broadcast %21 : vector<1x420xf32> to vector<8x420xf32>
    %24 = arith.mulf %22, %23 : vector<8x420xf32>
    %25 = arith.addf %19, %24 : vector<8x420xf32>
    %c0_4 = arith.constant 0 : index
    %c0_5 = arith.constant 0 : index
    %26 = vector.load %arg7[%c0_4, %c0_5] : memref<8x420xf32, #tpu.memory_space<vmem>>, vector<8x420xf32>
    tpu.vector_store %arg7[%c0_4, %c0_5], %25 {strides = array<i32>} : memref<8x420xf32, #tpu.memory_space<vmem>>, vector<8x420xf32>,
    %c0_6 = arith.constant 0 : index
    %c0_7 = arith.constant 0 : index
    %27 = vector.load %arg3[%c0_6, %c0_7] : memref<8x9xf32, #tpu.memory_space<vmem>>, vector<8x9xf32>
    %c0_8 = arith.constant 0 : index
    %c0_9 = arith.constant 0 : index
    %28 = vector.load %arg4[%c0_8, %c0_9] : memref<8x9xf32, #tpu.memory_space<vmem>>, vector<8x9xf32>
    %29 = vector.extract_strided_slice %27 {offsets = [0, 0], sizes = [8, 1], strides = [1, 1]} : vector<8x9xf32> to vector<8x1xf32>
    %30 = vector.extract_strided_slice %27 {offsets = [0, 1], sizes = [8, 1], strides = [1, 1]} : vector<8x9xf32> to vector<8x1xf32>
    %31 = vector.extract_strided_slice %27 {offsets = [0, 2], sizes = [8, 1], strides = [1, 1]} : vector<8x9xf32> to vector<8x1xf32>
    %32 = vector.extract_strided_slice %27 {offsets = [0, 3], sizes = [8, 1], strides = [1, 1]} : vector<8x9xf32> to vector<8x1xf32>
    %33 = vector.extract_strided_slice %27 {offsets = [0, 4], sizes = [8, 1], strides = [1, 1]} : vector<8x9xf32> to vector<8x1xf32>
    %34 = vector.extract_strided_slice %27 {offsets = [0, 5], sizes = [8, 1], strides = [1, 1]} : vector<8x9xf32> to vector<8x1xf32>
    %35 = vector.extract_strided_slice %27 {offsets = [0, 6], sizes = [8, 1], strides = [1, 1]} : vector<8x9xf32> to vector<8x1xf32>
    %36 = vector.extract_strided_slice %27 {offsets = [0, 7], sizes = [8, 1], strides = [1, 1]} : vector<8x9xf32> to vector<8x1xf32>
    %37 = vector.extract_strided_slice %27 {offsets = [0, 8], sizes = [8, 1], strides = [1, 1]} : vector<8x9xf32> to vector<8x1xf32>
    %38 = vector.extract_strided_slice %28 {offsets = [0, 0], sizes = [8, 1], strides = [1, 1]} : vector<8x9xf32> to vector<8x1xf32>
    %39 = vector.extract_strided_slice %28 {offsets = [0, 1], sizes = [8, 1], strides = [1, 1]} : vector<8x9xf32> to vector<8x1xf32>
    %40 = vector.extract_strided_slice %28 {offsets = [0, 2], sizes = [8, 1], strides = [1, 1]} : vector<8x9xf32> to vector<8x1xf32>
    %41 = vector.extract_strided_slice %28 {offsets = [0, 3], sizes = [8, 1], strides = [1, 1]} : vector<8x9xf32> to vector<8x1xf32>
    %42 = vector.extract_strided_slice %28 {offsets = [0, 4], sizes = [8, 1], strides = [1, 1]} : vector<8x9xf32> to vector<8x1xf32>
    %43 = vector.extract_strided_slice %28 {offsets = [0, 5], sizes = [8, 1], strides = [1, 1]} : vector<8x9xf32> to vector<8x1xf32>
    %44 = vector.extract_strided_slice %28 {offsets = [0, 6], sizes = [8, 1], strides = [1, 1]} : vector<8x9xf32> to vector<8x1xf32>
    %45 = vector.extract_strided_slice %28 {offsets = [0, 7], sizes = [8, 1], strides = [1, 1]} : vector<8x9xf32> to vector<8x1xf32>
    %46 = vector.extract_strided_slice %28 {offsets = [0, 8], sizes = [8, 1], strides = [1, 1]} : vector<8x9xf32> to vector<8x1xf32>
    %c0_10 = arith.constant 0 : index
    %c21 = arith.constant 21 : index
    %47 = vector.load %arg7[%c0_10, %c21] : memref<8x420xf32, #tpu.memory_space<vmem>>, vector<8x320xf32>
    %48 = vector.broadcast %29 : vector<8x1xf32> to vector<8x320xf32>
    %49 = arith.mulf %47, %48 : vector<8x320xf32>
    %c0_11 = arith.constant 0 : index
    %c0_12 = arith.constant 0 : index
    %50 = vector.load %arg7[%c0_11, %c0_12] : memref<8x420xf32, #tpu.memory_space<vmem>>, vector<8x320xf32>
    %51 = vector.broadcast %38 : vector<8x1xf32> to vector<8x320xf32>
    %52 = arith.mulf %50, %51 : vector<8x320xf32>
    %53 = arith.addf %49, %52 : vector<8x320xf32>
    %c0_13 = arith.constant 0 : index
    %c22 = arith.constant 22 : index
    %54 = vector.load %arg7[%c0_13, %c22] : memref<8x420xf32, #tpu.memory_space<vmem>>, vector<8x320xf32>
    %55 = vector.broadcast %30 : vector<8x1xf32> to vector<8x320xf32>
    %56 = arith.mulf %54, %55 : vector<8x320xf32>
    %c0_14 = arith.constant 0 : index
    %c2 = arith.constant 2 : index
    %57 = vector.load %arg7[%c0_14, %c2] : memref<8x420xf32, #tpu.memory_space<vmem>>, vector<8x320xf32>
    %58 = vector.broadcast %39 : vector<8x1xf32> to vector<8x320xf32>
    %59 = arith.mulf %57, %58 : vector<8x320xf32>
    %60 = arith.addf %56, %59 : vector<8x320xf32>
    %61 = arith.addf %53, %60 : vector<8x320xf32>
    %c0_15 = arith.constant 0 : index
    %c23 = arith.constant 23 : index
    %62 = vector.load %arg7[%c0_15, %c23] : memref<8x420xf32, #tpu.memory_space<vmem>>, vector<8x320xf32>
    %63 = vector.broadcast %31 : vector<8x1xf32> to vector<8x320xf32>
    %64 = arith.mulf %62, %63 : vector<8x320xf32>
    %c0_16 = arith.constant 0 : index
    %c4 = arith.constant 4 : index
    %65 = vector.load %arg7[%c0_16, %c4] : memref<8x420xf32, #tpu.memory_space<vmem>>, vector<8x320xf32>
    %66 = vector.broadcast %40 : vector<8x1xf32> to vector<8x320xf32>
    %67 = arith.mulf %65, %66 : vector<8x320xf32>
    %68 = arith.addf %64, %67 : vector<8x320xf32>
    %69 = arith.addf %61, %68 : vector<8x320xf32>
    %c0_17 = arith.constant 0 : index
    %c41 = arith.constant 41 : index
    %70 = vector.load %arg7[%c0_17, %c41] : memref<8x420xf32, #tpu.memory_space<vmem>>, vector<8x320xf32>
    %71 = vector.broadcast %32 : vector<8x1xf32> to vector<8x320xf32>
    %72 = arith.mulf %70, %71 : vector<8x320xf32>
    %c0_18 = arith.constant 0 : index
    %c40 = arith.constant 40 : index
    %73 = vector.load %arg7[%c0_18, %c40] : memref<8x420xf32, #tpu.memory_space<vmem>>, vector<8x320xf32>
    %74 = vector.broadcast %41 : vector<8x1xf32> to vector<8x320xf32>
    %75 = arith.mulf %73, %74 : vector<8x320xf32>
    %76 = arith.addf %72, %75 : vector<8x320xf32>
    %77 = arith.addf %69, %76 : vector<8x320xf32>
    %c0_19 = arith.constant 0 : index
    %c42 = arith.constant 42 : index
    %78 = vector.load %arg7[%c0_19, %c42] : memref<8x420xf32, #tpu.memory_space<vmem>>, vector<8x320xf32>
    %79 = vector.broadcast %33 : vector<8x1xf32> to vector<8x320xf32>
    %80 = arith.mulf %78, %79 : vector<8x320xf32>
    %c0_20 = arith.constant 0 : index
    %c42_21 = arith.constant 42 : index
    %81 = vector.load %arg7[%c0_20, %c42_21] : memref<8x420xf32, #tpu.memory_space<vmem>>, vector<8x320xf32>
    %82 = vector.broadcast %42 : vector<8x1xf32> to vector<8x320xf32>
    %83 = arith.mulf %81, %82 : vector<8x320xf32>
    %84 = arith.addf %80, %83 : vector<8x320xf32>
    %85 = arith.addf %77, %84 : vector<8x320xf32>
    %c0_22 = arith.constant 0 : index
    %c43 = arith.constant 43 : index
    %86 = vector.load %arg7[%c0_22, %c43] : memref<8x420xf32, #tpu.memory_space<vmem>>, vector<8x320xf32>
    %87 = vector.broadcast %34 : vector<8x1xf32> to vector<8x320xf32>
    %88 = arith.mulf %86, %87 : vector<8x320xf32>
    %c0_23 = arith.constant 0 : index
    %c44 = arith.constant 44 : index
    %89 = vector.load %arg7[%c0_23, %c44] : memref<8x420xf32, #tpu.memory_space<vmem>>, vector<8x320xf32>
    %90 = vector.broadcast %43 : vector<8x1xf32> to vector<8x320xf32>
    %91 = arith.mulf %89, %90 : vector<8x320xf32>
    %92 = arith.addf %88, %91 : vector<8x320xf32>
    %93 = arith.addf %85, %92 : vector<8x320xf32>
    %c0_24 = arith.constant 0 : index
    %c61 = arith.constant 61 : index
    %94 = vector.load %arg7[%c0_24, %c61] : memref<8x420xf32, #tpu.memory_space<vmem>>, vector<8x320xf32>
    %95 = vector.broadcast %35 : vector<8x1xf32> to vector<8x320xf32>
    %96 = arith.mulf %94, %95 : vector<8x320xf32>
    %c0_25 = arith.constant 0 : index
    %c80 = arith.constant 80 : index
    %97 = vector.load %arg7[%c0_25, %c80] : memref<8x420xf32, #tpu.memory_space<vmem>>, vector<8x320xf32>
    %98 = vector.broadcast %44 : vector<8x1xf32> to vector<8x320xf32>
    %99 = arith.mulf %97, %98 : vector<8x320xf32>
    %100 = arith.addf %96, %99 : vector<8x320xf32>
    %101 = arith.addf %93, %100 : vector<8x320xf32>
    %c0_26 = arith.constant 0 : index
    %c62 = arith.constant 62 : index
    %102 = vector.load %arg7[%c0_26, %c62] : memref<8x420xf32, #tpu.memory_space<vmem>>, vector<8x320xf32>
    %103 = vector.broadcast %36 : vector<8x1xf32> to vector<8x320xf32>
    %104 = arith.mulf %102, %103 : vector<8x320xf32>
    %c0_27 = arith.constant 0 : index
    %c82 = arith.constant 82 : index
    %105 = vector.load %arg7[%c0_27, %c82] : memref<8x420xf32, #tpu.memory_space<vmem>>, vector<8x320xf32>
    %106 = vector.broadcast %45 : vector<8x1xf32> to vector<8x320xf32>
    %107 = arith.mulf %105, %106 : vector<8x320xf32>
    %108 = arith.addf %104, %107 : vector<8x320xf32>
    %109 = arith.addf %101, %108 : vector<8x320xf32>
    %c0_28 = arith.constant 0 : index
    %c63 = arith.constant 63 : index
    %110 = vector.load %arg7[%c0_28, %c63] : memref<8x420xf32, #tpu.memory_space<vmem>>, vector<8x320xf32>
    %111 = vector.broadcast %37 : vector<8x1xf32> to vector<8x320xf32>
    %112 = arith.mulf %110, %111 : vector<8x320xf32>
    %c0_29 = arith.constant 0 : index
    %c84 = arith.constant 84 : index
    %113 = vector.load %arg7[%c0_29, %c84] : memref<8x420xf32, #tpu.memory_space<vmem>>, vector<8x320xf32>
    %114 = vector.broadcast %46 : vector<8x1xf32> to vector<8x320xf32>
    %115 = arith.mulf %113, %114 : vector<8x320xf32>
    %116 = arith.addf %112, %115 : vector<8x320xf32>
    %117 = arith.addf %109, %116 : vector<8x320xf32>
    %118 = vector.extract_strided_slice %117 {offsets = [0, 0], sizes = [8, 16], strides = [1, 1]} : vector<8x320xf32> to vector<8x16xf32>
    %c0_30 = arith.constant 0 : index
    %c0_31 = arith.constant 0 : index
    %119 = vector.load %arg8[%c0_30, %c0_31] : memref<8x256xf32, #tpu.memory_space<vmem>>, vector<8x16xf32>
    tpu.vector_store %arg8[%c0_30, %c0_31], %118 {strides = array<i32>} : memref<8x256xf32, #tpu.memory_space<vmem>>, vector<8x16xf32>,
    %120 = vector.extract_strided_slice %117 {offsets = [0, 20], sizes = [8, 16], strides = [1, 1]} : vector<8x320xf32> to vector<8x16xf32>
    %c0_32 = arith.constant 0 : index
    %c16 = arith.constant 16 : index
    %121 = vector.load %arg8[%c0_32, %c16] : memref<8x256xf32, #tpu.memory_space<vmem>>, vector<8x16xf32>
    tpu.vector_store %arg8[%c0_32, %c16], %120 {strides = array<i32>} : memref<8x256xf32, #tpu.memory_space<vmem>>, vector<8x16xf32>,
    %122 = vector.extract_strided_slice %117 {offsets = [0, 40], sizes = [8, 16], strides = [1, 1]} : vector<8x320xf32> to vector<8x16xf32>
    %c0_33 = arith.constant 0 : index
    %c32 = arith.constant 32 : index
    %123 = vector.load %arg8[%c0_33, %c32] : memref<8x256xf32, #tpu.memory_space<vmem>>, vector<8x16xf32>
    tpu.vector_store %arg8[%c0_33, %c32], %122 {strides = array<i32>} : memref<8x256xf32, #tpu.memory_space<vmem>>, vector<8x16xf32>,
    %124 = vector.extract_strided_slice %117 {offsets = [0, 60], sizes = [8, 16], strides = [1, 1]} : vector<8x320xf32> to vector<8x16xf32>
    %c0_34 = arith.constant 0 : index
    %c48 = arith.constant 48 : index
    %125 = vector.load %arg8[%c0_34, %c48] : memref<8x256xf32, #tpu.memory_space<vmem>>, vector<8x16xf32>
    tpu.vector_store %arg8[%c0_34, %c48], %124 {strides = array<i32>} : memref<8x256xf32, #tpu.memory_space<vmem>>, vector<8x16xf32>,
    %126 = vector.extract_strided_slice %117 {offsets = [0, 80], sizes = [8, 16], strides = [1, 1]} : vector<8x320xf32> to vector<8x16xf32>
    %c0_35 = arith.constant 0 : index
    %c64 = arith.constant 64 : index
    %127 = vector.load %arg8[%c0_35, %c64] : memref<8x256xf32, #tpu.memory_space<vmem>>, vector<8x16xf32>
    tpu.vector_store %arg8[%c0_35, %c64], %126 {strides = array<i32>} : memref<8x256xf32, #tpu.memory_space<vmem>>, vector<8x16xf32>,
    %128 = vector.extract_strided_slice %117 {offsets = [0, 100], sizes = [8, 16], strides = [1, 1]} : vector<8x320xf32> to vector<8x16xf32>
    %c0_36 = arith.constant 0 : index
    %c80_37 = arith.constant 80 : index
    %129 = vector.load %arg8[%c0_36, %c80_37] : memref<8x256xf32, #tpu.memory_space<vmem>>, vector<8x16xf32>
    tpu.vector_store %arg8[%c0_36, %c80_37], %128 {strides = array<i32>} : memref<8x256xf32, #tpu.memory_space<vmem>>, vector<8x16xf32>,
    %130 = vector.extract_strided_slice %117 {offsets = [0, 120], sizes = [8, 16], strides = [1, 1]} : vector<8x320xf32> to vector<8x16xf32>
    %c0_38 = arith.constant 0 : index
    %c96 = arith.constant 96 : index
    %131 = vector.load %arg8[%c0_38, %c96] : memref<8x256xf32, #tpu.memory_space<vmem>>, vector<8x16xf32>
    tpu.vector_store %arg8[%c0_38, %c96], %130 {strides = array<i32>} : memref<8x256xf32, #tpu.memory_space<vmem>>, vector<8x16xf32>,
    %132 = vector.extract_strided_slice %117 {offsets = [0, 140], sizes = [8, 16], strides = [1, 1]} : vector<8x320xf32> to vector<8x16xf32>
    %c0_39 = arith.constant 0 : index
    %c112 = arith.constant 112 : index
    %133 = vector.load %arg8[%c0_39, %c112] : memref<8x256xf32, #tpu.memory_space<vmem>>, vector<8x16xf32>
    tpu.vector_store %arg8[%c0_39, %c112], %132 {strides = array<i32>} : memref<8x256xf32, #tpu.memory_space<vmem>>, vector<8x16xf32>,
    %134 = vector.extract_strided_slice %117 {offsets = [0, 160], sizes = [8, 16], strides = [1, 1]} : vector<8x320xf32> to vector<8x16xf32>
    %c0_40 = arith.constant 0 : index
    %c128 = arith.constant 128 : index
    %135 = vector.load %arg8[%c0_40, %c128] : memref<8x256xf32, #tpu.memory_space<vmem>>, vector<8x16xf32>
    tpu.vector_store %arg8[%c0_40, %c128], %134 {strides = array<i32>} : memref<8x256xf32, #tpu.memory_space<vmem>>, vector<8x16xf32>,
    %136 = vector.extract_strided_slice %117 {offsets = [0, 180], sizes = [8, 16], strides = [1, 1]} : vector<8x320xf32> to vector<8x16xf32>
    %c0_41 = arith.constant 0 : index
    %c144 = arith.constant 144 : index
    %137 = vector.load %arg8[%c0_41, %c144] : memref<8x256xf32, #tpu.memory_space<vmem>>, vector<8x16xf32>
    tpu.vector_store %arg8[%c0_41, %c144], %136 {strides = array<i32>} : memref<8x256xf32, #tpu.memory_space<vmem>>, vector<8x16xf32>,
    %138 = vector.extract_strided_slice %117 {offsets = [0, 200], sizes = [8, 16], strides = [1, 1]} : vector<8x320xf32> to vector<8x16xf32>
    %c0_42 = arith.constant 0 : index
    %c160 = arith.constant 160 : index
    %139 = vector.load %arg8[%c0_42, %c160] : memref<8x256xf32, #tpu.memory_space<vmem>>, vector<8x16xf32>
    tpu.vector_store %arg8[%c0_42, %c160], %138 {strides = array<i32>} : memref<8x256xf32, #tpu.memory_space<vmem>>, vector<8x16xf32>,
    %140 = vector.extract_strided_slice %117 {offsets = [0, 220], sizes = [8, 16], strides = [1, 1]} : vector<8x320xf32> to vector<8x16xf32>
    %c0_43 = arith.constant 0 : index
    %c176 = arith.constant 176 : index
    %141 = vector.load %arg8[%c0_43, %c176] : memref<8x256xf32, #tpu.memory_space<vmem>>, vector<8x16xf32>
    tpu.vector_store %arg8[%c0_43, %c176], %140 {strides = array<i32>} : memref<8x256xf32, #tpu.memory_space<vmem>>, vector<8x16xf32>,
    %142 = vector.extract_strided_slice %117 {offsets = [0, 240], sizes = [8, 16], strides = [1, 1]} : vector<8x320xf32> to vector<8x16xf32>
    %c0_44 = arith.constant 0 : index
    %c192 = arith.constant 192 : index
    %143 = vector.load %arg8[%c0_44, %c192] : memref<8x256xf32, #tpu.memory_space<vmem>>, vector<8x16xf32>
    tpu.vector_store %arg8[%c0_44, %c192], %142 {strides = array<i32>} : memref<8x256xf32, #tpu.memory_space<vmem>>, vector<8x16xf32>,
    %144 = vector.extract_strided_slice %117 {offsets = [0, 260], sizes = [8, 16], strides = [1, 1]} : vector<8x320xf32> to vector<8x16xf32>
    %c0_45 = arith.constant 0 : index
    %c208 = arith.constant 208 : index
    %145 = vector.load %arg8[%c0_45, %c208] : memref<8x256xf32, #tpu.memory_space<vmem>>, vector<8x16xf32>
    tpu.vector_store %arg8[%c0_45, %c208], %144 {strides = array<i32>} : memref<8x256xf32, #tpu.memory_space<vmem>>, vector<8x16xf32>,
    %146 = vector.extract_strided_slice %117 {offsets = [0, 280], sizes = [8, 16], strides = [1, 1]} : vector<8x320xf32> to vector<8x16xf32>
    %c0_46 = arith.constant 0 : index
    %c224 = arith.constant 224 : index
    %147 = vector.load %arg8[%c0_46, %c224] : memref<8x256xf32, #tpu.memory_space<vmem>>, vector<8x16xf32>
    tpu.vector_store %arg8[%c0_46, %c224], %146 {strides = array<i32>} : memref<8x256xf32, #tpu.memory_space<vmem>>, vector<8x16xf32>,
    %148 = vector.extract_strided_slice %117 {offsets = [0, 300], sizes = [8, 16], strides = [1, 1]} : vector<8x320xf32> to vector<8x16xf32>
    %c0_47 = arith.constant 0 : index
    %c240 = arith.constant 240 : index
    %149 = vector.load %arg8[%c0_47, %c240] : memref<8x256xf32, #tpu.memory_space<vmem>>, vector<8x16xf32>
    tpu.vector_store %arg8[%c0_47, %c240], %148 {strides = array<i32>} : memref<8x256xf32, #tpu.memory_space<vmem>>, vector<8x16xf32>,
    %c0_48 = arith.constant 0 : index
    %c0_49 = arith.constant 0 : index
    %150 = vector.load %arg8[%c0_48, %c0_49] : memref<8x256xf32, #tpu.memory_space<vmem>>, vector<8x256xf32>
    %151 = arith.truncf %150 : vector<8x256xf32> to vector<8x256xbf16>
    %c0_50 = arith.constant 0 : index
    %c0_51 = arith.constant 0 : index
    %c0_52 = arith.constant 0 : index
    %152 = vector.load %arg5[%c0_50, %c0_51, %c0_52] : memref<1x8x256xbf16, #tpu.memory_space<vmem>>, vector<1x8x256xbf16>
    %153 = vector.shape_cast %152 : vector<1x8x256xbf16> to vector<8x256xbf16>
    %154 = vector.shape_cast %151 : vector<8x256xbf16> to vector<1x8x256xbf16>
    tpu.vector_store %arg5[%c0_50, %c0_51, %c0_52], %154 {strides = array<i32>} : memref<1x8x256xbf16, #tpu.memory_space<vmem>>, vector<1x8x256xbf16>,
    %cst = arith.constant dense<0.000000e+00> : vector<8xf32>
    %155 = vector.multi_reduction <add>, %150, %cst [1] : vector<8x256xf32> to vector<8xf32>
    %156 = vector.shape_cast %155 : vector<8xf32> to vector<8x1xf32>
    %c0_53 = arith.constant 0 : index
    %c0_54 = arith.constant 0 : index
    %c0_55 = arith.constant 0 : index
    %157 = vector.load %arg6[%c0_53, %c0_54, %c0_55] : memref<1x8x2xf32, #tpu.memory_space<vmem>>, vector<1x8x1xf32>
    %158 = vector.shape_cast %157 : vector<1x8x1xf32> to vector<8x1xf32>
    %159 = vector.shape_cast %156 : vector<8x1xf32> to vector<1x8x1xf32>
    tpu.vector_store %arg6[%c0_53, %c0_54, %c0_55], %159 {strides = array<i32>} : memref<1x8x2xf32, #tpu.memory_space<vmem>>, vector<1x8x1xf32>,
    %160 = arith.mulf %150, %150 : vector<8x256xf32>
    %cst_56 = arith.constant dense<0.000000e+00> : vector<8xf32>
    %161 = vector.multi_reduction <add>, %160, %cst_56 [1] : vector<8x256xf32> to vector<8xf32>
    %162 = vector.shape_cast %161 : vector<8xf32> to vector<8x1xf32>
    %c0_57 = arith.constant 0 : index
    %c0_58 = arith.constant 0 : index
    %c1 = arith.constant 1 : index
    %163 = vector.load %arg6[%c0_57, %c0_58, %c1] : memref<1x8x2xf32, #tpu.memory_space<vmem>>, vector<1x8x1xf32>
    %164 = vector.shape_cast %163 : vector<1x8x1xf32> to vector<8x1xf32>
    %165 = vector.shape_cast %162 : vector<8x1xf32> to vector<1x8x1xf32>
    tpu.vector_store %arg6[%c0_57, %c0_58, %c1], %165 {strides = array<i32>} : memref<1x8x2xf32, #tpu.memory_space<vmem>>, vector<1x8x1xf32>,
    return
  }
  func.func @transform_0(%arg0: i32) -> (i32, i32, i32) {
    %c0_i32 = arith.constant 0 : i32
    %c0_i32_0 = arith.constant 0 : i32
    %c0_i32_1 = arith.constant 0 : i32
    return %arg0, %c0_i32, %c0_i32_0 : i32, i32, i32
  }
  func.func @transform_1(%arg0: i32) -> (i32, i32) {
    %c0_i32 = arith.constant 0 : i32
    %c0_i32_0 = arith.constant 0 : i32
    %c0_i32_1 = arith.constant 0 : i32
    return %c0_i32, %c0_i32_0 : i32, i32
  }
  func.func @transform_2(%arg0: i32) -> (i32, i32) {
    %c0_i32 = arith.constant 0 : i32
    %c0_i32_0 = arith.constant 0 : i32
    %c0_i32_1 = arith.constant 0 : i32
    return %c0_i32, %c0_i32_0 : i32, i32
  }
  func.func @transform_3(%arg0: i32) -> (i32, i32) {
    %c0_i32 = arith.constant 0 : i32
    %c0_i32_0 = arith.constant 0 : i32
    %c0_i32_1 = arith.constant 0 : i32
    return %c0_i32, %c0_i32_0 : i32, i32
  }
  func.func @transform_4(%arg0: i32) -> (i32, i32, i32) {
    %c0_i32 = arith.constant 0 : i32
    %c0_i32_0 = arith.constant 0 : i32
    %c0_i32_1 = arith.constant 0 : i32
    return %arg0, %c0_i32, %c0_i32_0 : i32, i32, i32
  }
  func.func @transform_5(%arg0: i32) -> (i32, i32, i32) {
    %c0_i32 = arith.constant 0 : i32
    %c0_i32_0 = arith.constant 0 : i32
    %c0_i32_1 = arith.constant 0 : i32
    return %arg0, %c0_i32, %c0_i32_0 : i32, i32, i32
  }
}

</mosaic_0001>

<llo_original>
// kernel: tpu_custom_call.1
$region0: #{tpu_custom_call.1}
  #allocation0 [shape = 'u32[]', space=smem, size = 0x4, offset = 0x4, fixed_abs, tag = 'smem constant byte address 0x4 - core index']
  #allocation1 [shape = 'u32[144,128]{1,0:T(1,128)}', space=vmem, size = 0x12000, scoped, tag = 'internal scratch']
  #allocation2 [shape = 'f32[8,420]{1,0:T(8,128)}', space=vmem, size = 0x4000, scoped, tag = 'scratch operand']
  #allocation3 [shape = 'f32[8,256]{1,0:T(8,128)}', space=vmem, size = 0x2000, scoped, tag = 'scratch operand']
  %s0 = inlined_call_operand.hbm [shape: f32[2,4,420], index: 0, kind: input, shape index: {}]
  %s1 = inlined_call_operand.vmem [shape: f32[8,4], index: 1, kind: input, shape index: {}]
  %s2 = inlined_call_operand.vmem [shape: f32[8,9], index: 2, kind: input, shape index: {}]
  %s3 = inlined_call_operand.vmem [shape: f32[8,9], index: 3, kind: input, shape index: {}]
  %s4 = inlined_call_operand.hbm [shape: bf16[2,8,256], index: 4, kind: output, shape index: {0}]
  %s5 = inlined_call_operand.vmem [shape: f32[2,8,2], index: 5, kind: output, shape index: {1}]
  %6 = xla_tuple %s4, %s5
  %s7 = sld [smem:[#allocation0]]
  $region61: #{tpu_custom_call.1} parent=0
    _
  %s9 = ssub.s32 1, %s7
  %s10 = scalar_select 0, %s9, %s7
  $region1: #{tpu_custom_call.1} parent=0
    #allocation4 [shape = 'u8[16384]{0}', space=vmem, size = 0x4000, scoped, tag = 'input window, operand 0']
    #allocation5 [shape = 's32[2]{0}', space=sflag, size = 0x8, scoped, tag = 'scoped memory for tpu_custom_call.1']
    #allocation6 [shape = 's32[2]{0}', space=sflag, size = 0x8, scoped, tag = 'scoped memory for tpu_custom_call.1']
    #allocation7 [shape = 'u8[8192]{0}', space=vmem, size = 0x2000, scoped, tag = 'output window, operand 0']
    %11 = vsyncpa [#allocation5], 0
    %s12 = scalar_lea.sflag [#allocation5], 1
    %13 = vsyncpa %s12, 0
    %14 = vsyncpa [#allocation6], 0
    %s15 = scalar_lea.sflag [#allocation6], 1
    %16 = vsyncpa %s15, 0
    loop: start=0, step=1, limit=4
    $region2: #{tpu_custom_call.1} parent=1 // loop_pre_header
      _
    $region3: #{tpu_custom_call.1} parent=1 // loop_header
      %s18 = sphi 0, %s22
      %p19 = scmp.ge.s32.totalorder %s18, 4
      %s28 = sphi 0, %s30
      %s31 = sphi 0, %s28
      %s32 = sphi 0, %s31
      %s48 = sphi 0, %s32
      %s52 = sphi 0, %s52
      %s54 = sphi 0, %s52
      %s55 = sphi 0, %s54
      %s69 = sphi 0, %s55
      %s73 = sphi 0, %s73
      %s75 = sphi 0, %s73
      %s76 = sphi 0, %s75
      %s90 = sphi 0, %s76
      %s94 = sphi 0, %s94
      %s96 = sphi 0, %s94
      %s97 = sphi 0, %s96
      %s111 = sphi 0, %s97
      %s117 = sphi 0, %s119
      %s120 = sphi 0, %s117
      %s121 = sphi 0, %s120
      %s137 = sphi 0, %s121
      %s143 = sphi 0, %s145
      %s146 = sphi 0, %s143
      %s147 = sphi 0, %s146
      %s163 = sphi 0, %s147
    $region4: #{tpu_custom_call.1} parent=1 // loop_header_branch
      %21 = sbr.rel (%p19) target = $region8
    $region5: #{tpu_custom_call.1} parent=1 // loop_body
      %s23 = ssub.s32 %s18, 1
      %s24 = ssub.s32 %s18, 2
      %s25 = sadd.s32 %s18, 1
      %s26 = ssub.s32 %s18, %s25
      %p27 = scmp.eq.s32.totalorder %s26, 0
      %s29 = sadd.s32 %s28, 1
      %s30 = scalar_select %p27, %s28, %s29
      %p33 = pneg %p27
      %p34 = scmp.eq.s32.totalorder %s18, 1
      %p35 = por %p33, %p34
      %p36 = scmp.ne.s32.totalorder %s28, %s31
      %p37 = scmp.eq.s32.totalorder %s18, 0
      %p38 = por %p36, %p37
      %p39 = scmp.ne.s32.totalorder %s28, %s31
      %p40 = scmp.eq.s32.totalorder %s23, 1
      %p41 = por %p39, %p40
      %p42 = scmp.ne.s32.totalorder %s31, %s32
      %p43 = scmp.eq.s32.totalorder %s23, 0
      %p44 = por %p42, %p43
      %p45 = scmp.ne.s32.totalorder %s31, %s32
      %p46 = scmp.eq.s32.totalorder %s24, 1
      %p47 = por %p45, %p46
      %p49 = scmp.ne.s32.totalorder %s32, %s48
      %p50 = scmp.eq.s32.totalorder %s24, 0
      %p51 = por %p49, %p50
      %s53 = sadd.s32 %s52, 1
      %p56 = scmp.eq.s32.totalorder %s18, 1
      %p57 = scmp.ne.s32.totalorder %s52, %s54
      %p58 = scmp.eq.s32.totalorder %s18, 0
      %p59 = por %p57, %p58
      %p60 = scmp.ne.s32.totalorder %s52, %s54
      %p61 = scmp.eq.s32.totalorder %s23, 1
      %p62 = por %p60, %p61
      %p63 = scmp.ne.s32.totalorder %s54, %s55
      %p64 = scmp.eq.s32.totalorder %s23, 0
      %p65 = por %p63, %p64
      %p66 = scmp.ne.s32.totalorder %s54, %s55
      %p67 = scmp.eq.s32.totalorder %s24, 1
      %p68 = por %p66, %p67
      %p70 = scmp.ne.s32.totalorder %s55, %s69
      %p71 = scmp.eq.s32.totalorder %s24, 0
      %p72 = por %p70, %p71
      %s74 = sadd.s32 %s73, 1
      %p77 = scmp.eq.s32.totalorder %s18, 1
      %p78 = scmp.ne.s32.totalorder %s73, %s75
      %p79 = scmp.eq.s32.totalorder %s18, 0
      %p80 = por %p78, %p79
      %p81 = scmp.ne.s32.totalorder %s73, %s75
      %p82 = scmp.eq.s32.totalorder %s23, 1
      %p83 = por %p81, %p82
      %p84 = scmp.ne.s32.totalorder %s75, %s76
      %p85 = scmp.eq.s32.totalorder %s23, 0
      %p86 = por %p84, %p85
      %p87 = scmp.ne.s32.totalorder %s75, %s76
      %p88 = scmp.eq.s32.totalorder %s24, 1
      %p89 = por %p87, %p88
      %p91 = scmp.ne.s32.totalorder %s76, %s90
      %p92 = scmp.eq.s32.totalorder %s24, 0
      %p93 = por %p91, %p92
      %s95 = sadd.s32 %s94, 1
      %p98 = scmp.eq.s32.totalorder %s18, 1
      %p99 = scmp.ne.s32.totalorder %s94, %s96
      %p100 = scmp.eq.s32.totalorder %s18, 0
      %p101 = por %p99, %p100
      %p102 = scmp.ne.s32.totalorder %s94, %s96
      %p103 = scmp.eq.s32.totalorder %s23, 1
      %p104 = por %p102, %p103
      %p105 = scmp.ne.s32.totalorder %s96, %s97
      %p106 = scmp.eq.s32.totalorder %s23, 0
      %p107 = por %p105, %p106
      %p108 = scmp.ne.s32.totalorder %s96, %s97
      %p109 = scmp.eq.s32.totalorder %s24, 1
      %p110 = por %p108, %p109
      %p112 = scmp.ne.s32.totalorder %s97, %s111
      %p113 = scmp.eq.s32.totalorder %s24, 0
      %p114 = por %p112, %p113
      %s115 = ssub.s32 %s18, %s25
      %p116 = scmp.eq.s32.totalorder %s115, 0
      %s118 = sadd.s32 %s117, 1
      %s119 = scalar_select %p116, %s117, %s118
      %p122 = pneg %p116
      %p123 = scmp.eq.s32.totalorder %s18, 1
      %p124 = por %p122, %p123
      %p125 = scmp.ne.s32.totalorder %s117, %s120
      %p126 = scmp.eq.s32.totalorder %s18, 0
      %p127 = por %p125, %p126
      %p128 = scmp.ne.s32.totalorder %s117, %s120
      %p129 = scmp.eq.s32.totalorder %s23, 1
      %p130 = por %p128, %p129
      %p131 = scmp.ne.s32.totalorder %s120, %s121
      %p132 = scmp.eq.s32.totalorder %s23, 0
      %p133 = por %p131, %p132
      %p134 = scmp.ne.s32.totalorder %s120, %s121
      %p135 = scmp.eq.s32.totalorder %s24, 1
      %p136 = por %p134, %p135
      %p138 = scmp.ne.s32.totalorder %s121, %s137
      %p139 = scmp.eq.s32.totalorder %s24, 0
      %p140 = por %p138, %p139
      %s141 = ssub.s32 %s18, %s25
      %p142 = scmp.eq.s32.totalorder %s141, 0
      %s144 = sadd.s32 %s143, 1
      %s145 = scalar_select %p142, %s143, %s144
      %p148 = pneg %p142
      %p149 = scmp.eq.s32.totalorder %s18, 1
      %p150 = por %p148, %p149
      %p151 = scmp.ne.s32.totalorder %s143, %s146
      %p152 = scmp.eq.s32.totalorder %s18, 0
      %p153 = por %p151, %p152
      %p154 = scmp.ne.s32.totalorder %s143, %s146
      %p155 = scmp.eq.s32.totalorder %s23, 1
      %p156 = por %p154, %p155
      %p157 = scmp.ne.s32.totalorder %s146, %s147
      %p158 = scmp.eq.s32.totalorder %s23, 0
      %p159 = por %p157, %p158
      %p160 = scmp.ne.s32.totalorder %s146, %s147
      %p161 = scmp.eq.s32.totalorder %s24, 1
      %p162 = por %p160, %p161
      %p164 = scmp.ne.s32.totalorder %s147, %s163
      %p165 = scmp.eq.s32.totalorder %s24, 0
      %p166 = por %p164, %p165
      %p167 = scmp.le.s32.totalorder 1, %s18
      %p168 = scmp.lt.s32.totalorder %s18, 3
      %p169 = pnand %p167, %p168
      %p170 = pneg %p169
      // Predicated region
      $region9: #{tpu_custom_call.1} parent=5 // pred_check
        _
      $region10: #{tpu_custom_call.1} parent=5 // pred_check_branch
        %172 = sbr.rel (%p169) target = $region12
      $region11: #{tpu_custom_call.1} parent=5 // pred_region
        %s173 = ssub.s32 %s18, 1
        // Predicated region
        $region13: #{tpu_custom_call.1} parent=11 // pred_check
          %p174 = pneg %p65
        $region14: #{tpu_custom_call.1} parent=11 // pred_check_branch
          %176 = sbr.rel (%p174) target = $region16
        $region15: #{tpu_custom_call.1} parent=11 // pred_region
          _
        $region16: #{tpu_custom_call.1} parent=11 // pred_fallthru
          _
        // Predicated region
        $region17: #{tpu_custom_call.1} parent=11 // pred_check
          %p177 = pneg %p86
        $region18: #{tpu_custom_call.1} parent=11 // pred_check_branch
          %179 = sbr.rel (%p177) target = $region20
        $region19: #{tpu_custom_call.1} parent=11 // pred_region
          _
        $region20: #{tpu_custom_call.1} parent=11 // pred_fallthru
          _
        // Predicated region
        $region21: #{tpu_custom_call.1} parent=11 // pred_check
          %p180 = pneg %p107
        $region22: #{tpu_custom_call.1} parent=11 // pred_check_branch
          %182 = sbr.rel (%p180) target = $region24
        $region23: #{tpu_custom_call.1} parent=11 // pred_region
          _
        $region24: #{tpu_custom_call.1} parent=11 // pred_fallthru
          _
      $region12: #{tpu_custom_call.1} parent=5 // pred_fallthru
        _
      %p183 = scmp.lt.s32.totalorder %s18, 2
      // Predicated region
      $region25: #{tpu_custom_call.1} parent=5 // pred_check
        %p184 = pneg %p183
      $region26: #{tpu_custom_call.1} parent=5 // pred_check_branch
        %186 = sbr.rel (%p184) target = $region28
      $region27: #{tpu_custom_call.1} parent=5 // pred_region
        // Predicated region
        $region29: #{tpu_custom_call.1} parent=27 // pred_check
          %p187 = pneg %p38
        $region30: #{tpu_custom_call.1} parent=27 // pred_check_branch
          %189 = sbr.rel (%p187) target = $region32
        $region31: #{tpu_custom_call.1} parent=27 // pred_region
          %s190 = sand.u32 %s28, 1
          %s191 = scalar_lea.sflag [#allocation5], %s190
          %s192 = sand.u32 %s28, 1
          %s193 = smul.addr %s192, 16
          %s194 = scalar_lea.vmem [#allocation4], %s193
          %s196 = ssub.s32 256, 256
          %197 = vsyncadd %s191, %s196
          %s198 = smul.addr %s18, 4
          %s199 = smul.addr %s198, 64
          %s200 = scalar_lea.hbm %s0, %s199
          %s202 = sshll.u32 %s194, 4
          %s203 = int_to_ptr.vmem [resolvable:$true] %s202
          %205 = dma.hbm_to_vmem [thread:$0]  %s200, 256, %s203, %s191
        $region32: #{tpu_custom_call.1} parent=27 // pred_fallthru
          _
      $region28: #{tpu_custom_call.1} parent=5 // pred_fallthru
        _
      %p206 = scmp.le.s32.totalorder 1, %s18
      %p207 = scmp.lt.s32.totalorder %s18, 3
      %p208 = pnand %p206, %p207
      %p209 = pneg %p208
      // Predicated region
      $region33: #{tpu_custom_call.1} parent=5 // pred_check
        _
      $region34: #{tpu_custom_call.1} parent=5 // pred_check_branch
        %211 = sbr.rel (%p208) target = $region36
      $region35: #{tpu_custom_call.1} parent=5 // pred_region
        %s212 = ssub.s32 %s18, 1
        %s213 = sand.u32 %s31, 1
        %s214 = scalar_lea.sflag [#allocation5], %s213
        %s215 = sand.u32 %s31, 1
        %s216 = smul.addr %s215, 16
        %s217 = scalar_lea.vmem [#allocation4], %s216
        // Predicated region
        $region37: #{tpu_custom_call.1} parent=35 // pred_check
          %p218 = pneg %p44
        $region38: #{tpu_custom_call.1} parent=35 // pred_check_branch
          %220 = sbr.rel (%p218) target = $region40
        $region39: #{tpu_custom_call.1} parent=35 // pred_region
          %221 = dma.done %s214, 256
        $region40: #{tpu_custom_call.1} parent=35 // pred_fallthru
          _
        %s222 = sand.u32 %s31, 1
        %s223 = scalar_lea.sflag [#allocation5], %s222
        %s224 = sand.u32 %s31, 1
        %s225 = smul.addr %s224, 16
        %s226 = scalar_lea.vmem [#allocation4], %s225
        %p227 = pneg %p44
        %p228 = pneg %p41
        %p229 = pneg %p65
        %p230 = pneg %p62
        %p231 = pneg %p86
        %p232 = pneg %p83
        %p233 = pneg %p107
        %p234 = pneg %p104
        %p235 = pneg %p133
        %p236 = pneg %p130
        %s237 = sand.u32 %s120, 1
        %s238 = scalar_lea.sflag [#allocation6], %s237
        %s239 = sand.u32 %s120, 1
        %s240 = smul.addr %s239, 8
        %s241 = scalar_lea.vmem [#allocation7], %s240
        %p242 = pneg %p159
        %p243 = pneg %p156
        %p244 = scmp.lt.s32.totalorder %s23, 1
        %s245 = scalar_select %p244, %s23, 1
        %s246 = smul.addr %s245, 8
        %s247 = scalar_lea.vmem %s5, %s246
        %p248 = scmp.lt.s32.totalorder %s23, 1
        %s249 = scalar_select %p248, %s23, 1
        %s250 = smul.addr %s249, 8
        %s251 = scalar_lea.vmem %s5, %s250
        %v252 = vld [vmem:[%s217] sm:$0xff]
        %v253 = vld [vmem:[%s217 + $0x8] sm:$0xff]
        %v254 = vld [vmem:[%s1] sm:$0xff]
        %256 = vset.pattern.permute.xlu0 0
        %257 = vperm.xlu0 %256, %v254
        %v258 = vpop.permute.xlu0 %257
        %v262 = vlaneseq
        %v263 = vshrl.u32 %v262, 7
        %v264 = vsub.s32 0, %v263
        %v265 = vrot.slane %v252, %v264
        %v266 = vlaneseq
        %v267 = vshrl.u32 %v266, 7
        %v268 = vsub.s32 4, %v267
        %v269 = vrot.slane %v252, %v268
        %v270 = vlaneseq
        %v271 = vshrl.u32 %v270, 7
        %v272 = vsub.s32 0, %v271
        %v273 = vrot.slane %v253, %v272
        %v274 = vlaneseq
        %v275 = vshrl.u32 %v274, 7
        %v276 = vsub.s32 4, %v275
        %v277 = vrot.slane %v253, %v276
        %v282 = vlaneseq
        %v283 = vshrl.u32 %v282, 7
        %v284 = vsub.s32 0, %v283
        %v285 = vrot.slane %v265, %v284
        %v286 = vlaneseq
        %v287 = vshrl.u32 %v286, 7
        %v288 = vsub.s32 0, %v287
        %v289 = vrot.slane %v269, %v288
        %v290 = vlaneseq
        %v291 = vshrl.u32 %v290, 7
        %v292 = vsub.s32 0, %v291
        %v293 = vrot.slane %v273, %v292
        %v294 = vlaneseq
        %v295 = vshrl.u32 %v294, 7
        %v296 = vsub.s32 0, %v295
        %v297 = vrot.slane %v277, %v296
        %v298 = vmul.f32 %v258, %v285
        %v299 = vmul.f32 %v258, %v289
        %v300 = vmul.f32 %v258, %v293
        %v301 = vmul.f32 %v258, %v297
        %302 = vset.pattern.permute.xlu0 1
        %303 = vperm.xlu0 %302, %v254
        %v304 = vpop.permute.xlu0 %303
        %v306 = vlaneseq
        %v307 = vshrl.u32 %v306, 7
        %v308 = vsub.s32 1, %v307
        %v309 = vrot.slane %v252, %v308
        %v310 = vlaneseq
        %v311 = vshrl.u32 %v310, 7
        %v312 = vsub.s32 5, %v311
        %v313 = vrot.slane %v252, %v312
        %v314 = vlaneseq
        %v315 = vshrl.u32 %v314, 7
        %v316 = vsub.s32 1, %v315
        %v317 = vrot.slane %v253, %v316
        %v318 = vlaneseq
        %v319 = vshrl.u32 %v318, 7
        %v320 = vsub.s32 5, %v319
        %v321 = vrot.slane %v253, %v320
        %v326 = vlaneseq
        %v327 = vshrl.u32 %v326, 7
        %v328 = vsub.s32 1, %v327
        %v329 = vrot.slane %v309, %v328
        %v330 = vlaneseq
        %v331 = vshrl.u32 %v330, 7
        %v332 = vsub.s32 1, %v331
        %v333 = vrot.slane %v313, %v332
        %v334 = vlaneseq
        %v335 = vshrl.u32 %v334, 7
        %v336 = vsub.s32 1, %v335
        %v337 = vrot.slane %v317, %v336
        %v338 = vlaneseq
        %v339 = vshrl.u32 %v338, 7
        %v340 = vsub.s32 1, %v339
        %v341 = vrot.slane %v321, %v340
        %v342 = vmul.f32 %v304, %v329
        %v343 = vmul.f32 %v304, %v333
        %v344 = vmul.f32 %v304, %v337
        %v345 = vmul.f32 %v304, %v341
        %v346 = vadd.f32 %v298, %v342
        %v347 = vadd.f32 %v299, %v343
        %v348 = vadd.f32 %v300, %v344
        %v349 = vadd.f32 %v301, %v345
        %350 = vset.pattern.permute.xlu0 2
        %351 = vperm.xlu0 %350, %v254
        %v352 = vpop.permute.xlu0 %351
        %v354 = vlaneseq
        %v355 = vshrl.u32 %v354, 7
        %v356 = vsub.s32 2, %v355
        %v357 = vrot.slane %v252, %v356
        %v358 = vlaneseq
        %v359 = vshrl.u32 %v358, 7
        %v360 = vsub.s32 6, %v359
        %v361 = vrot.slane %v252, %v360
        %v362 = vlaneseq
        %v363 = vshrl.u32 %v362, 7
        %v364 = vsub.s32 2, %v363
        %v365 = vrot.slane %v253, %v364
        %v366 = vlaneseq
        %v367 = vshrl.u32 %v366, 7
        %v368 = vsub.s32 6, %v367
        %v369 = vrot.slane %v253, %v368
        %v374 = vlaneseq
        %v375 = vshrl.u32 %v374, 7
        %v376 = vsub.s32 2, %v375
        %v377 = vrot.slane %v357, %v376
        %v378 = vlaneseq
        %v379 = vshrl.u32 %v378, 7
        %v380 = vsub.s32 2, %v379
        %v381 = vrot.slane %v361, %v380
        %v382 = vlaneseq
        %v383 = vshrl.u32 %v382, 7
        %v384 = vsub.s32 2, %v383
        %v385 = vrot.slane %v365, %v384
        %v386 = vlaneseq
        %v387 = vshrl.u32 %v386, 7
        %v388 = vsub.s32 2, %v387
        %v389 = vrot.slane %v369, %v388
        %v390 = vmul.f32 %v352, %v377
        %v391 = vmul.f32 %v352, %v381
        %v392 = vmul.f32 %v352, %v385
        %v393 = vmul.f32 %v352, %v389
        %v394 = vadd.f32 %v346, %v390
        %v395 = vadd.f32 %v347, %v391
        %v396 = vadd.f32 %v348, %v392
        %v397 = vadd.f32 %v349, %v393
        %398 = vset.pattern.permute.xlu0 3
        %399 = vperm.xlu0 %398, %v254
        %v400 = vpop.permute.xlu0 %399
        %v402 = vlaneseq
        %v403 = vshrl.u32 %v402, 7
        %v404 = vsub.s32 3, %v403
        %v405 = vrot.slane %v252, %v404
        %v406 = vlaneseq
        %v407 = vshrl.u32 %v406, 7
        %v408 = vsub.s32 7, %v407
        %v409 = vrot.slane %v252, %v408
        %v410 = vlaneseq
        %v411 = vshrl.u32 %v410, 7
        %v412 = vsub.s32 3, %v411
        %v413 = vrot.slane %v253, %v412
        %v414 = vlaneseq
        %v415 = vshrl.u32 %v414, 7
        %v416 = vsub.s32 7, %v415
        %v417 = vrot.slane %v253, %v416
        %v422 = vlaneseq
        %v423 = vshrl.u32 %v422, 7
        %v424 = vsub.s32 3, %v423
        %v425 = vrot.slane %v405, %v424
        %v426 = vlaneseq
        %v427 = vshrl.u32 %v426, 7
        %v428 = vsub.s32 3, %v427
        %v429 = vrot.slane %v409, %v428
        %v430 = vlaneseq
        %v431 = vshrl.u32 %v430, 7
        %v432 = vsub.s32 3, %v431
        %v433 = vrot.slane %v413, %v432
        %v434 = vlaneseq
        %v435 = vshrl.u32 %v434, 7
        %v436 = vsub.s32 3, %v435
        %v437 = vrot.slane %v417, %v436
        %v438 = vmul.f32 %v400, %v425
        %v439 = vmul.f32 %v400, %v429
        %v440 = vmul.f32 %v400, %v433
        %v441 = vmul.f32 %v400, %v437
        %v442 = vadd.f32 %v394, %v438
        %v443 = vadd.f32 %v395, %v439
        %v444 = vadd.f32 %v396, %v440
        %v445 = vadd.f32 %v397, %v441
        %446 = vst [vmem:[#allocation2] sm:$0xff] %v442
        %447 = vst [vmem:[#allocation2 + $0x8] sm:$0xff] %v443
        %448 = vst [vmem:[#allocation2 + $0x10] sm:$0xff] %v444
        %vm449 = vcmask 293888
        %450 = vst.msk [vmem:[#allocation2 + $0x18] sm:$0xff] %vm449, %v445
        %v451 = vld [vmem:[%s2] sm:$0xff]
        %v452 = vld [vmem:[%s3] sm:$0xff]
        %v453 = vld [vmem:[#allocation2] sm:$0xff]
        %v454 = vld [vmem:[#allocation2 + $0x8] sm:$0xff]
        %v455 = vld [vmem:[#allocation2 + $0x10] sm:$0xff]
        %457 = vset.pattern.permute.xlu0 0
        %458 = vperm.xlu0 %457, %v451
        %v459 = vpop.permute.xlu0 %458
        %v461 = vmul.f32 %v453, %v459
        %v462 = vmul.f32 %v454, %v459
        %v463 = vmul.f32 %v455, %v459
        %465 = vset.pattern.permute.xlu0 0
        %466 = vperm.xlu0 %465, %v452
        %v467 = vpop.permute.xlu0 %466
        %v469 = vmul.f32 %v453, %v467
        %v470 = vmul.f32 %v454, %v467
        %v471 = vmul.f32 %v455, %v467
        %475 = vrot.lane.b32.xlu0 %v469, 21
        %v476 = vpop.permute.xlu0 %475
        %477 = vrot.lane.b32.xlu0 %v470, 21
        %v478 = vpop.permute.xlu0 %477
        %479 = vrot.lane.b32.xlu0 %v471, 21
        %v480 = vpop.permute.xlu0 %479
        %vm481 = vcmask 171008
        %v482 = vsel %vm481, %v476, %v478
        %v483 = vsel %vm481, %v478, %v480
        %v487 = vadd.f32 %v461, %v476
        %v488 = vadd.f32 %v462, %v482
        %v489 = vadd.f32 %v463, %v483
        %490 = vset.pattern.permute.xlu0 1
        %491 = vperm.xlu0 %490, %v451
        %v492 = vpop.permute.xlu0 %491
        %v494 = vmul.f32 %v453, %v492
        %v495 = vmul.f32 %v454, %v492
        %v496 = vmul.f32 %v455, %v492
        %497 = vset.pattern.permute.xlu0 1
        %498 = vperm.xlu0 %497, %v452
        %v499 = vpop.permute.xlu0 %498
        %v501 = vmul.f32 %v453, %v499
        %v502 = vmul.f32 %v454, %v499
        %v503 = vmul.f32 %v455, %v499
        %507 = vrot.lane.b32.xlu0 %v501, 20
        %v508 = vpop.permute.xlu0 %507
        %509 = vrot.lane.b32.xlu0 %v502, 20
        %v510 = vpop.permute.xlu0 %509
        %511 = vrot.lane.b32.xlu0 %v503, 20
        %v512 = vpop.permute.xlu0 %511
        %vm513 = vcmask 162816
        %v514 = vsel %vm513, %v508, %v510
        %v515 = vsel %vm513, %v510, %v512
        %v519 = vadd.f32 %v494, %v508
        %v520 = vadd.f32 %v495, %v514
        %v521 = vadd.f32 %v496, %v515
        %525 = vrot.lane.b32.xlu0 %v519, 127
        %v526 = vpop.permute.xlu0 %525
        %527 = vrot.lane.b32.xlu0 %v520, 127
        %v528 = vpop.permute.xlu0 %527
        %529 = vrot.lane.b32.xlu0 %v521, 127
        %v530 = vpop.permute.xlu0 %529
        %vm531 = vcmask 1039360
        %v532 = vsel %vm531, %v526, %v528
        %v533 = vsel %vm531, %v528, %v530
        %v537 = vadd.f32 %v487, %v532
        %v538 = vadd.f32 %v488, %v533
        %v539 = vadd.f32 %v489, %v530
        %540 = vset.pattern.permute.xlu0 2
        %541 = vperm.xlu0 %540, %v451
        %v542 = vpop.permute.xlu0 %541
        %v544 = vmul.f32 %v453, %v542
        %v545 = vmul.f32 %v454, %v542
        %v546 = vmul.f32 %v455, %v542
        %547 = vset.pattern.permute.xlu0 2
        %548 = vperm.xlu0 %547, %v452
        %v549 = vpop.permute.xlu0 %548
        %v551 = vmul.f32 %v453, %v549
        %v552 = vmul.f32 %v454, %v549
        %v553 = vmul.f32 %v455, %v549
        %557 = vrot.lane.b32.xlu0 %v551, 19
        %v558 = vpop.permute.xlu0 %557
        %559 = vrot.lane.b32.xlu0 %v552, 19
        %v560 = vpop.permute.xlu0 %559
        %561 = vrot.lane.b32.xlu0 %v553, 19
        %v562 = vpop.permute.xlu0 %561
        %vm563 = vcmask 154624
        %v564 = vsel %vm563, %v558, %v560
        %v565 = vsel %vm563, %v560, %v562
        %v569 = vadd.f32 %v544, %v558
        %v570 = vadd.f32 %v545, %v564
        %v571 = vadd.f32 %v546, %v565
        %575 = vrot.lane.b32.xlu0 %v569, 126
        %v576 = vpop.permute.xlu0 %575
        %577 = vrot.lane.b32.xlu0 %v570, 126
        %v578 = vpop.permute.xlu0 %577
        %579 = vrot.lane.b32.xlu0 %v571, 126
        %v580 = vpop.permute.xlu0 %579
        %vm581 = vcmask 1031168
        %v582 = vsel %vm581, %v576, %v578
        %v583 = vsel %vm581, %v578, %v580
        %v587 = vadd.f32 %v537, %v582
        %v588 = vadd.f32 %v538, %v583
        %v589 = vadd.f32 %v539, %v580
        %590 = vset.pattern.permute.xlu0 3
        %591 = vperm.xlu0 %590, %v451
        %v592 = vpop.permute.xlu0 %591
        %v594 = vmul.f32 %v453, %v592
        %v595 = vmul.f32 %v454, %v592
        %v596 = vmul.f32 %v455, %v592
        %597 = vset.pattern.permute.xlu0 3
        %598 = vperm.xlu0 %597, %v452
        %v599 = vpop.permute.xlu0 %598
        %v601 = vmul.f32 %v453, %v599
        %v602 = vmul.f32 %v454, %v599
        %v603 = vmul.f32 %v455, %v599
        %607 = vrot.lane.b32.xlu0 %v601, 1
        %v608 = vpop.permute.xlu0 %607
        %609 = vrot.lane.b32.xlu0 %v602, 1
        %v610 = vpop.permute.xlu0 %609
        %611 = vrot.lane.b32.xlu0 %v603, 1
        %v612 = vpop.permute.xlu0 %611
        %vm613 = vcmask 7168
        %v614 = vsel %vm613, %v608, %v610
        %v615 = vsel %vm613, %v610, %v612
        %v619 = vadd.f32 %v594, %v608
        %v620 = vadd.f32 %v595, %v614
        %v621 = vadd.f32 %v596, %v615
        %625 = vrot.lane.b32.xlu0 %v619, 108
        %v626 = vpop.permute.xlu0 %625
        %627 = vrot.lane.b32.xlu0 %v620, 108
        %v628 = vpop.permute.xlu0 %627
        %629 = vrot.lane.b32.xlu0 %v621, 108
        %v630 = vpop.permute.xlu0 %629
        %vm631 = vcmask 883712
        %v632 = vsel %vm631, %v626, %v628
        %v633 = vsel %vm631, %v628, %v630
        %v637 = vadd.f32 %v587, %v632
        %v638 = vadd.f32 %v588, %v633
        %v639 = vadd.f32 %v589, %v630
        %640 = vset.pattern.permute.xlu0 4
        %641 = vperm.xlu0 %640, %v451
        %v642 = vpop.permute.xlu0 %641
        %v644 = vmul.f32 %v453, %v642
        %v645 = vmul.f32 %v454, %v642
        %v646 = vmul.f32 %v455, %v642
        %647 = vset.pattern.permute.xlu0 4
        %648 = vperm.xlu0 %647, %v452
        %v649 = vpop.permute.xlu0 %648
        %v651 = vmul.f32 %v453, %v649
        %v652 = vmul.f32 %v454, %v649
        %v653 = vmul.f32 %v455, %v649
        %v654 = vadd.f32 %v644, %v651
        %v655 = vadd.f32 %v645, %v652
        %v656 = vadd.f32 %v646, %v653
        %660 = vrot.lane.b32.xlu0 %v654, 107
        %v661 = vpop.permute.xlu0 %660
        %662 = vrot.lane.b32.xlu0 %v655, 107
        %v663 = vpop.permute.xlu0 %662
        %664 = vrot.lane.b32.xlu0 %v656, 107
        %v665 = vpop.permute.xlu0 %664
        %vm666 = vcmask 875520
        %v667 = vsel %vm666, %v661, %v663
        %v668 = vsel %vm666, %v663, %v665
        %v672 = vadd.f32 %v637, %v667
        %v673 = vadd.f32 %v638, %v668
        %v674 = vadd.f32 %v639, %v665
        %675 = vset.pattern.permute.xlu0 5
        %676 = vperm.xlu0 %675, %v451
        %v677 = vpop.permute.xlu0 %676
        %v679 = vmul.f32 %v453, %v677
        %v680 = vmul.f32 %v454, %v677
        %v681 = vmul.f32 %v455, %v677
        %682 = vset.pattern.permute.xlu0 5
        %683 = vperm.xlu0 %682, %v452
        %v684 = vpop.permute.xlu0 %683
        %v686 = vmul.f32 %v453, %v684
        %v687 = vmul.f32 %v454, %v684
        %v688 = vmul.f32 %v455, %v684
        %692 = vrot.lane.b32.xlu0 %v686, 127
        %v693 = vpop.permute.xlu0 %692
        %694 = vrot.lane.b32.xlu0 %v687, 127
        %v695 = vpop.permute.xlu0 %694
        %696 = vrot.lane.b32.xlu0 %v688, 127
        %v697 = vpop.permute.xlu0 %696
        %v698 = vsel %vm531, %v693, %v695
        %v699 = vsel %vm531, %v695, %v697
        %v703 = vadd.f32 %v679, %v698
        %v704 = vadd.f32 %v680, %v699
        %v705 = vadd.f32 %v681, %v697
        %709 = vrot.lane.b32.xlu0 %v703, 106
        %v710 = vpop.permute.xlu0 %709
        %711 = vrot.lane.b32.xlu0 %v704, 106
        %v712 = vpop.permute.xlu0 %711
        %713 = vrot.lane.b32.xlu0 %v705, 106
        %v714 = vpop.permute.xlu0 %713
        %vm715 = vcmask 867328
        %v716 = vsel %vm715, %v710, %v712
        %v717 = vsel %vm715, %v712, %v714
        %v721 = vadd.f32 %v672, %v716
        %v722 = vadd.f32 %v673, %v717
        %v723 = vadd.f32 %v674, %v714
        %724 = vset.pattern.permute.xlu0 6
        %725 = vperm.xlu0 %724, %v451
        %v726 = vpop.permute.xlu0 %725
        %v728 = vmul.f32 %v453, %v726
        %v729 = vmul.f32 %v454, %v726
        %v730 = vmul.f32 %v455, %v726
        %v731 = vld [vmem:[#allocation2] sm:$0xff]
        %v732 = vld [vmem:[#allocation2 + $0x8] sm:$0xff]
        %v733 = vld [vmem:[#allocation2 + $0x10] sm:$0xff]
        %v734 = vld [vmem:[#allocation2 + $0x18] sm:$0xff]
        %735 = vset.pattern.permute.xlu0 6
        %736 = vperm.xlu0 %735, %v452
        %v737 = vpop.permute.xlu0 %736
        %v739 = vmul.f32 %v731, %v737
        %v740 = vmul.f32 %v732, %v737
        %v741 = vmul.f32 %v733, %v737
        %v742 = vmul.f32 %v734, %v737
        %747 = vrot.lane.b32.xlu0 %v739, 109
        %v748 = vpop.permute.xlu0 %747
        %749 = vrot.lane.b32.xlu0 %v740, 109
        %v750 = vpop.permute.xlu0 %749
        %751 = vrot.lane.b32.xlu0 %v741, 109
        %v752 = vpop.permute.xlu0 %751
        %753 = vrot.lane.b32.xlu0 %v742, 109
        %v754 = vpop.permute.xlu0 %753
        %vm755 = vcmask 891904
        %v756 = vsel %vm755, %v748, %v750
        %v757 = vsel %vm755, %v750, %v752
        %v758 = vsel %vm755, %v752, %v754
        %v762 = vadd.f32 %v728, %v756
        %v763 = vadd.f32 %v729, %v757
        %v764 = vadd.f32 %v730, %v758
        %768 = vrot.lane.b32.xlu0 %v762, 88
        %v769 = vpop.permute.xlu0 %768
        %770 = vrot.lane.b32.xlu0 %v763, 88
        %v771 = vpop.permute.xlu0 %770
        %772 = vrot.lane.b32.xlu0 %v764, 88
        %v773 = vpop.permute.xlu0 %772
        %vm774 = vcmask 719872
        %v775 = vsel %vm774, %v769, %v771
        %v776 = vsel %vm774, %v771, %v773
        %v780 = vadd.f32 %v721, %v775
        %v781 = vadd.f32 %v722, %v776
        %v782 = vadd.f32 %v723, %v773
        %783 = vset.pattern.permute.xlu0 7
        %784 = vperm.xlu0 %783, %v451
        %v785 = vpop.permute.xlu0 %784
        %v787 = vmul.f32 %v453, %v785
        %v788 = vmul.f32 %v454, %v785
        %v789 = vmul.f32 %v455, %v785
        %790 = vset.pattern.permute.xlu0 7
        %791 = vperm.xlu0 %790, %v452
        %v792 = vpop.permute.xlu0 %791
        %v794 = vmul.f32 %v731, %v792
        %v795 = vmul.f32 %v732, %v792
        %v796 = vmul.f32 %v733, %v792
        %v797 = vmul.f32 %v734, %v792
        %802 = vrot.lane.b32.xlu0 %v794, 108
        %v803 = vpop.permute.xlu0 %802
        %804 = vrot.lane.b32.xlu0 %v795, 108
        %v805 = vpop.permute.xlu0 %804
        %806 = vrot.lane.b32.xlu0 %v796, 108
        %v807 = vpop.permute.xlu0 %806
        %808 = vrot.lane.b32.xlu0 %v797, 108
        %v809 = vpop.permute.xlu0 %808
        %v810 = vsel %vm631, %v803, %v805
        %v811 = vsel %vm631, %v805, %v807
        %v812 = vsel %vm631, %v807, %v809
        %v816 = vadd.f32 %v787, %v810
        %v817 = vadd.f32 %v788, %v811
        %v818 = vadd.f32 %v789, %v812
        %822 = vrot.lane.b32.xlu0 %v816, 87
        %v823 = vpop.permute.xlu0 %822
        %824 = vrot.lane.b32.xlu0 %v817, 87
        %v825 = vpop.permute.xlu0 %824
        %826 = vrot.lane.b32.xlu0 %v818, 87
        %v827 = vpop.permute.xlu0 %826
        %vm828 = vcmask 711680
        %v829 = vsel %vm828, %v823, %v825
        %v830 = vsel %vm828, %v825, %v827
        %v834 = vadd.f32 %v780, %v829
        %v835 = vadd.f32 %v781, %v830
        %v836 = vadd.f32 %v782, %v827
        %837 = vset.pattern.permute.xlu0 8
        %838 = vperm.xlu0 %837, %v451
        %v839 = vpop.permute.xlu0 %838
        %v841 = vmul.f32 %v453, %v839
        %v842 = vmul.f32 %v454, %v839
        %v843 = vmul.f32 %v455, %v839
        %844 = vset.pattern.permute.xlu0 8
        %845 = vperm.xlu0 %844, %v452
        %v846 = vpop.permute.xlu0 %845
        %v848 = vmul.f32 %v731, %v846
        %v849 = vmul.f32 %v732, %v846
        %v850 = vmul.f32 %v733, %v846
        %v851 = vmul.f32 %v734, %v846
        %856 = vrot.lane.b32.xlu0 %v848, 107
        %v857 = vpop.permute.xlu0 %856
        %858 = vrot.lane.b32.xlu0 %v849, 107
        %v859 = vpop.permute.xlu0 %858
        %860 = vrot.lane.b32.xlu0 %v850, 107
        %v861 = vpop.permute.xlu0 %860
        %862 = vrot.lane.b32.xlu0 %v851, 107
        %v863 = vpop.permute.xlu0 %862
        %v864 = vsel %vm666, %v857, %v859
        %v865 = vsel %vm666, %v859, %v861
        %v866 = vsel %vm666, %v861, %v863
        %v870 = vadd.f32 %v841, %v864
        %v871 = vadd.f32 %v842, %v865
        %v872 = vadd.f32 %v843, %v866
        %876 = vrot.lane.b32.xlu0 %v870, 86
        %v877 = vpop.permute.xlu0 %876
        %878 = vrot.lane.b32.xlu0 %v871, 86
        %v879 = vpop.permute.xlu0 %878
        %880 = vrot.lane.b32.xlu0 %v872, 86
        %v881 = vpop.permute.xlu0 %880
        %vm882 = vcmask 703488
        %v883 = vsel %vm882, %v877, %v879
        %v884 = vsel %vm882, %v879, %v881
        %v888 = vadd.f32 %v834, %v883
        %v889 = vadd.f32 %v835, %v884
        %v890 = vadd.f32 %v836, %v881
        %892 = vrot.lane.b32.xlu0 %v888, 107
        %v893 = vpop.permute.xlu0 %892
        %vm895 = vcmask 130048
        %896 = vst.msk [vmem:[#allocation3] sm:$0xff] %vm895, %v893
        %897 = vrot.lane.b32.xlu0 %v888, 103
        %v898 = vpop.permute.xlu0 %897
        %vm900 = vcmask 261248
        %901 = vst.msk [vmem:[#allocation3] sm:$0xff] %vm900, %v898
        %902 = vrot.lane.b32.xlu0 %v888, 99
        %v903 = vpop.permute.xlu0 %902
        %vm905 = vcmask 392448
        %906 = vst.msk [vmem:[#allocation3] sm:$0xff] %vm905, %v903
        %907 = vrot.lane.b32.xlu0 %v888, 95
        %v908 = vpop.permute.xlu0 %907
        %vm910 = vcmask 523648
        %911 = vst.msk [vmem:[#allocation3] sm:$0xff] %vm910, %v908
        %912 = vrot.lane.b32.xlu0 %v888, 91
        %v913 = vpop.permute.xlu0 %912
        %vm915 = vcmask 654848
        %916 = vst.msk [vmem:[#allocation3] sm:$0xff] %vm915, %v913
        %918 = vrot.lane.b32.xlu0 %v888, 87
        %v919 = vpop.permute.xlu0 %918
        %920 = vrot.lane.b32.xlu0 %v889, 87
        %v921 = vpop.permute.xlu0 %920
        %v922 = vsel %vm828, %v919, %v921
        %vm924 = vcmask 786048
        %925 = vst.msk [vmem:[#allocation3] sm:$0xff] %vm924, %v922
        %926 = vrot.lane.b32.xlu0 %v889, 83
        %v927 = vpop.permute.xlu0 %926
        %vm929 = vcmask 917248
        %930 = vst.msk [vmem:[#allocation3] sm:$0xff] %vm929, %v927
        %931 = vrot.lane.b32.xlu0 %v889, 79
        %v932 = vpop.permute.xlu0 %931
        %vm934 = vcmask 1048448
        %935 = vst.msk [vmem:[#allocation3] sm:$0xff] %vm934, %v932
        %936 = vrot.lane.b32.xlu0 %v889, 75
        %v937 = vpop.permute.xlu0 %936
        %939 = vst.msk [vmem:[#allocation3 + $0x8] sm:$0xff] %vm895, %v937
        %940 = vrot.lane.b32.xlu0 %v889, 71
        %v941 = vpop.permute.xlu0 %940
        %943 = vst.msk [vmem:[#allocation3 + $0x8] sm:$0xff] %vm900, %v941
        %944 = vrot.lane.b32.xlu0 %v889, 67
        %v945 = vpop.permute.xlu0 %944
        %947 = vst.msk [vmem:[#allocation3 + $0x8] sm:$0xff] %vm905, %v945
        %949 = vrot.lane.b32.xlu0 %v889, 63
        %v950 = vpop.permute.xlu0 %949
        %951 = vrot.lane.b32.xlu0 %v890, 63
        %v952 = vpop.permute.xlu0 %951
        %vm953 = vcmask 515072
        %v954 = vsel %vm953, %v950, %v952
        %956 = vst.msk [vmem:[#allocation3 + $0x8] sm:$0xff] %vm910, %v954
        %957 = vrot.lane.b32.xlu0 %v890, 59
        %v958 = vpop.permute.xlu0 %957
        %960 = vst.msk [vmem:[#allocation3 + $0x8] sm:$0xff] %vm915, %v958
        %961 = vrot.lane.b32.xlu0 %v890, 55
        %v962 = vpop.permute.xlu0 %961
        %964 = vst.msk [vmem:[#allocation3 + $0x8] sm:$0xff] %vm924, %v962
        %965 = vrot.lane.b32.xlu0 %v890, 51
        %v966 = vpop.permute.xlu0 %965
        %968 = vst.msk [vmem:[#allocation3 + $0x8] sm:$0xff] %vm929, %v966
        %969 = vrot.lane.b32.xlu0 %v890, 47
        %v970 = vpop.permute.xlu0 %969
        %972 = vst.msk [vmem:[#allocation3 + $0x8] sm:$0xff] %vm934, %v970
        %v973 = vld [vmem:[#allocation3] sm:$0xff]
        %v974 = vld [vmem:[#allocation3 + $0x8] sm:$0xff]
        %v975 = vpack.c.bf16 %v973, %v973
        %v976 = vpack.c.bf16 %v974, %v974
        %v979 = vunpack.c.l.b16 %v975
        %v980 = vunpack.c.l.b16 %v976
        %v981 = vpack.c.b16 %v980, %v979
        %983 = vst [vmem:[%s241] sm:$0xff] %v981
        %v984 = vadd.f32 %v973, %v974
        %985 = vadd.xlane.f32.xlu0 %v984
        %v986 = vpop.xlane.xlu0 %985
        %987 = vst.msk [vmem:[%s251] sm:$0xff] %vm613, %v986
        %v988 = vmul.f32 %v973, %v973
        %v989 = vmul.f32 %v974, %v974
        %v990 = vadd.f32 %v988, %v989
        %991 = vadd.xlane.f32.xlu0 %v990
        %v992 = vpop.xlane.xlu0 %991
        %vm993 = vcmask 15368
        %994 = vst.msk [vmem:[%s251] sm:$0xff] %vm993, %v992
        %s995 = sand.u32 %s120, 1
        %s996 = scalar_lea.sflag [#allocation6], %s995
        %s997 = sand.u32 %s120, 1
        %s998 = smul.addr %s997, 8
        %s999 = scalar_lea.vmem [#allocation7], %s998
        %p1000 = scmp.lt.s32.totalorder %s23, 1
        %s1001 = scalar_select %p1000, %s23, 1
        %s1002 = smul.addr %s1001, 8
        %s1003 = scalar_lea.vmem %s5, %s1002
        // Predicated region
        $region41: #{tpu_custom_call.1} parent=35 // pred_check
          %p1004 = pneg %p130
        $region42: #{tpu_custom_call.1} parent=35 // pred_check_branch
          %1006 = sbr.rel (%p1004) target = $region44
        $region43: #{tpu_custom_call.1} parent=35 // pred_region
          %s1008 = ssub.s32 128, 128
          %1009 = vsyncadd %s996, %s1008
          %s1010 = smul.addr %s23, 2
          %s1011 = smul.addr %s1010, 64
          %s1012 = scalar_lea.hbm %s4, %s1011
          %s1014 = sshll.u32 %s999, 4
          %s1015 = int_to_ptr.vmem [resolvable:$true] %s1014
          %1017 = dma.vmem_to_hbm [thread:$0]  %s1015, 128, %s1012, %s996
        $region44: #{tpu_custom_call.1} parent=35 // pred_fallthru
          _
        // Predicated region
        $region45: #{tpu_custom_call.1} parent=35 // pred_check
          %p1018 = pneg %p156
        $region46: #{tpu_custom_call.1} parent=35 // pred_check_branch
          %1020 = sbr.rel (%p1018) target = $region48
        $region47: #{tpu_custom_call.1} parent=35 // pred_region
          _
        $region48: #{tpu_custom_call.1} parent=35 // pred_fallthru
          _
      $region36: #{tpu_custom_call.1} parent=5 // pred_fallthru
        _
      %p1021 = scmp.le.s32.totalorder 2, %s18
      // Predicated region
      $region49: #{tpu_custom_call.1} parent=5 // pred_check
        %p1022 = pneg %p1021
      $region50: #{tpu_custom_call.1} parent=5 // pred_check_branch
        %1024 = sbr.rel (%p1022) target = $region52
      $region51: #{tpu_custom_call.1} parent=5 // pred_region
        %s1025 = ssub.s32 %s18, 2
        // Predicated region
        $region53: #{tpu_custom_call.1} parent=51 // pred_check
          %p1026 = pneg %p136
        $region54: #{tpu_custom_call.1} parent=51 // pred_check_branch
          %1028 = sbr.rel (%p1026) target = $region56
        $region55: #{tpu_custom_call.1} parent=51 // pred_region
          %s1029 = sand.u32 %s121, 1
          %s1030 = scalar_lea.sflag [#allocation6], %s1029
          %s1031 = sand.u32 %s121, 1
          %s1032 = smul.addr %s1031, 8
          %s1033 = scalar_lea.vmem [#allocation7], %s1032
          %1034 = dma.done %s1030, 128
        $region56: #{tpu_custom_call.1} parent=51 // pred_fallthru
          _
        // Predicated region
        $region57: #{tpu_custom_call.1} parent=51 // pred_check
          %p1035 = pneg %p162
        $region58: #{tpu_custom_call.1} parent=51 // pred_check_branch
          %1037 = sbr.rel (%p1035) target = $region60
        $region59: #{tpu_custom_call.1} parent=51 // pred_region
          %p1038 = scmp.lt.s32.totalorder %s24, 1
          %s1039 = scalar_select %p1038, %s24, 1
          %s1040 = smul.addr %s1039, 8
          %s1041 = scalar_lea.vmem %s5, %s1040
        $region60: #{tpu_custom_call.1} parent=51 // pred_fallthru
          _
      $region52: #{tpu_custom_call.1} parent=5 // pred_fallthru
        _
    $region6: #{tpu_custom_call.1} parent=1 // loop_footer
      %s22 = sadd.s32 1, %s18
    $region7: #{tpu_custom_call.1} parent=1 // loop_footer_branch
      %17 = sbr.rel target = $region3
    $region8: #{tpu_custom_call.1} parent=1 // loop_exit
      _
    %1042 = vsyncpa [#allocation5], 1
    %s1043 = scalar_lea.sflag [#allocation5], 1
    %1044 = vsyncpa %s1043, 1
    %1045 = vsyncpa [#allocation6], 1
    %s1046 = scalar_lea.sflag [#allocation6], 1
    %1047 = vsyncpa %s1046, 1

</llo_original>
